<compile_context>
chip_gen: v7x
topology: tpu7x:2x2x1
jax: 0.10.0
libtpu: 0.0.40
codegen_flags: <defaults>
</compile_context>

<pallas_src>
import jax
import jax.numpy as jnp
from jax.experimental import pallas as pl
from jax.experimental.pallas import tpu as pltpu


def _copy_kernel(x_ref, o_ref):
    # Pure pass-through: load the VMEM tile and store it to the output tile.
    o_ref[...] = x_ref[...]


# Dtypes we run the copy kernel for; anything else (bool, int4/fp4, ...) is
# returned unchanged — identity needs no kernel and sub-byte packing rules
# would only add risk.
_KERNEL_DTYPES = frozenset(
    jnp.dtype(d)
    for d in (
        jnp.float32,
        jnp.bfloat16,
        jnp.float16,
        jnp.int32,
        jnp.uint32,
        jnp.int16,
        jnp.uint16,
        jnp.int8,
        jnp.uint8,
    )
)


def _tile_budget_bytes():
    """Per-tile, per-buffer VMEM budget, chosen per TPU generation."""
    try:
        kind = jax.devices()[0].device_kind.lower()
    except Exception:
        kind = ""
    if ("v6" in kind) or ("v7" in kind):
        # ~6 MiB tiles: 4 double-buffered tiles ~ 24 MiB, well under v6e's
        # 128 MiB and v7x's 64 MiB physical VMEM; cuts the ~0.35 us per-step
        # overhead to <5% of a tile step at 1.3-3.2 TB/s HBM.
        return 6 * 1024 * 1024
    # v5e (and unknown chips): amortization is already fine at ~0.82 TB/s;
    # stay small so VMEM headroom is never the risk.
    return 3 * 1024 * 1024


def _sublane_pack(dtype):
    """Rows per vreg for this dtype: 8 for 32-bit, 16 for 16-bit, 32 for 8-bit."""
    itemsize = jnp.dtype(dtype).itemsize
    if itemsize >= 4:
        return 8
    return 8 * (4 // itemsize)


def _pick_lanes(size, max_lanes=8192):
    """Largest multiple of 128 (<= max_lanes) that divides `size`, else 0."""
    best = 0
    lane = 128
    cap = min(size, max_lanes)
    while lane <= cap:
        if size % lane == 0:
            best = lane
        lane += 128
    return best


def base_model_forward(x, *, min_kernel_bytes=1 << 20):
    """Identity 'forward' for the abstract BaseModel.

    The fastest semantics-preserving implementation of identity moves zero
    bytes, so by default inputs smaller than `min_kernel_bytes` are returned
    directly.  Pass `min_kernel_bytes=0` to force the Pallas copy kernel
    (used by the self-test below).
    """
    # Degenerate inputs: identity needs no kernel, avoid empty/0-d grids.
    if x.ndim == 0 or x.size == 0:
        return x

    itemsize = jnp.dtype(x.dtype).itemsize
    nbytes = x.size * itemsize
    if nbytes < min_kernel_bytes:
        return x
    if jnp.dtype(x.dtype) not in _KERNEL_DTYPES:
        return x

    orig_shape = x.shape
    pack = _sublane_pack(x.dtype)
    budget = _tile_budget_bytes()

    # Lane-dense repack: ignore the original trailing dim (often a narrow
    # spatial W -> masked vst.msk partial stores saturating the single vst
    # slot) and use the widest 128-multiple that divides the flat size.
    # Fall back to the original trailing-dim scheme only when no 128-multiple
    # divides the size (edge blocks are then handled by Pallas masking).
    lanes = _pick_lanes(x.size)
    if lanes == 0:
        lanes = orig_shape[-1]
    rows = x.size // lanes
    x2d = x.reshape(rows, lanes)

    # Lane tile: full lane extent when it fits the budget (lane-dense,
    # unmasked stores); otherwise the largest 128-multiple that fits.
    if lanes * itemsize * pack <= budget:
        tl = lanes
    else:
        tl = max(128, (budget // (pack * itemsize * 128)) * 128)

    # Row tile: as tall as the budget allows, dtype-pack aligned.  The
    # full-dim block exception covers ragged row counts.
    tr_max = max(pack, budget // (tl * itemsize))
    if rows <= tr_max:
        tr = rows
    else:
        tr = max(pack, (tr_max // pack) * pack)

    # Megacore (v7x has 2 TensorCores): ensure a multi-MiB array gets at
    # least 2 grid blocks so "parallel" semantics can shard across cores.
    if (
        nbytes >= (4 << 20)
        and pl.cdiv(rows, tr) * pl.cdiv(lanes, tl) < 2
        and rows >= 2 * pack
    ):
        tr = max(pack, ((rows // 2) // pack) * pack)

    grid = (pl.cdiv(rows, tr), pl.cdiv(lanes, tl))
    tile_bytes = tr * tl * itemsize
    # Double-buffered input + output tiles, plus slack; capped so it is safe
    # even against v7x's 64 MiB physical VMEM.
    vmem_limit = min(48 << 20, max(32 << 20, 4 * tile_bytes + (4 << 20)))

    out = pl.pallas_call(
        _copy_kernel,
        out_shape=jax.ShapeDtypeStruct((rows, lanes), x.dtype),
        grid=grid,
        in_specs=[pl.BlockSpec((tr, tl), lambda i, j: (i, j))],
        out_specs=pl.BlockSpec((tr, tl), lambda i, j: (i, j)),
        # Identity copy: let the output reuse the input HBM buffer.
        input_output_aliases={0: 0},
        cost_estimate=pl.CostEstimate(
            flops=0, transcendentals=0, bytes_accessed=2 * nbytes
        ),
        compiler_params=pltpu.CompilerParams(
            dimension_semantics=("parallel", "parallel"),
            vmem_limit_bytes=vmem_limit,
        ),
    )(x2d)

    return out.reshape(orig_shape)


if __name__ == "__main__":
    key = jax.random.PRNGKey(0)
    # Small NCHW input consistent with a typical BaseModel subclass.
    x = jax.random.normal(key, (2, 4, 16, 16), dtype=jnp.float32)

    # min_kernel_bytes=0 forces the Pallas path even for this small example
    # (the production default short-circuits identity for < 1 MiB inputs).
    y = base_model_forward(x, min_kernel_bytes=0)
    jax.block_until_ready(y)

    assert y.shape == x.shape and y.dtype == x.dtype
    assert bool(jnp.array_equal(y, x))
    print("KERNEL_OK")
</pallas_src>

<mosaic_0001>
module attributes {stable_mosaic.version = 11 : i64} {
  func.func @_copy_kernel(%arg0: i32, %arg1: i32, %arg2: memref<1x2048xf32, #tpu.memory_space<vmem>>, %arg3: memref<1x2048xf32, #tpu.memory_space<vmem>>) attributes {dimension_semantics = [#tpu.dimension_semantics<parallel>, #tpu.dimension_semantics<parallel>], iteration_bounds = array<i64: 1, 1>, scalar_prefetch = 0 : i64, scratch_operands = 0 : i64, tpu.core_type = #tpu.core_type<tc>, window_params = [{transform_indices = @transform_0, window_bounds = array<i64: 1, 2048>}, {transform_indices = @transform_1, window_bounds = array<i64: 1, 2048>}]} {
    %c0 = arith.constant 0 : index
    %c0_0 = arith.constant 0 : index
    %0 = vector.load %arg2[%c0, %c0_0] : memref<1x2048xf32, #tpu.memory_space<vmem>>, vector<1x2048xf32>
    %c0_1 = arith.constant 0 : index
    %c0_2 = arith.constant 0 : index
    %1 = vector.load %arg3[%c0_1, %c0_2] : memref<1x2048xf32, #tpu.memory_space<vmem>>, vector<1x2048xf32>
    tpu.vector_store %arg3[%c0_1, %c0_2], %0 {strides = array<i32>} : memref<1x2048xf32, #tpu.memory_space<vmem>>, vector<1x2048xf32>,
    return
  }
  func.func @transform_0(%arg0: i32, %arg1: i32) -> (i32, i32) {
    %c0_i32 = arith.constant 0 : i32
    return %arg0, %arg1 : i32, i32
  }
  func.func @transform_1(%arg0: i32, %arg1: i32) -> (i32, i32) {
    %c0_i32 = arith.constant 0 : i32
    return %arg0, %arg1 : i32, i32
  }
}

</mosaic_0001>

<llo_original>
// kernel: tpu_custom_call.1
$region0: #{tpu_custom_call.1}
  #allocation0 [shape = 'u32[]', space=smem, size = 0x4, offset = 0x4, fixed_abs, tag = 'smem constant byte address 0x4 - core index']
  #allocation1 [shape = 'u32[144,128]{1,0:T(1,128)}', space=vmem, size = 0x12000, scoped, tag = 'internal scratch']
  %s0 = inlined_call_operand.hbm [shape: f32[1,2048], index: 0, kind: input, shape index: {}, may-alias: {0,1}]
  %s1 = inlined_call_operand.hbm [shape: f32[1,2048], index: 1, kind: output, shape index: {}, may-alias: {0,1}]
  %s2 = sld [smem:[#allocation0]]
  $region18: #{tpu_custom_call.1} parent=0
    _
  %s4 = ssub.s32 1, %s2
  %s5 = scalar_select 0, %s4, %s2
  $region1: #{tpu_custom_call.1} parent=0
    #allocation2 [shape = 'u8[8192]{0}', space=vmem, size = 0x2000, scoped, tag = 'input window, operand 0, single buffered']
    #allocation3 [shape = 's32[1]{0}', space=sflag, size = 0x4, scoped, tag = 'scoped memory for tpu_custom_call.1']
    #allocation4 [shape = 's32[1]{0}', space=sflag, size = 0x4, scoped, tag = 'scoped memory for tpu_custom_call.1']
    #allocation5 [shape = 'u8[8192]{0}', space=vmem, size = 0x2000, scoped, tag = 'output window, operand 0, single buffered']
    %6 = vsyncpa [#allocation3], 0
    %7 = vsyncpa [#allocation4], 0
    // Predicated region
    $region2: #{tpu_custom_call.1} parent=1 // pred_check
      _
    $region3: #{tpu_custom_call.1} parent=1 // pred_check_branch
      %9 = sbr.rel (0) target = $region5
    $region4: #{tpu_custom_call.1} parent=1 // pred_region
      %s11 = ssub.s32 256, 256
      %12 = vsyncadd [#allocation3], %s11
      %s14 = sshll.u32 [#allocation2], 4
      %s15 = int_to_ptr.vmem [resolvable:$true] %s14
      %17 = dma.hbm_to_vmem [thread:$0]  %s0, 256, %s15, [#allocation3]
    $region5: #{tpu_custom_call.1} parent=1 // pred_fallthru
      _
    // Predicated region
    $region6: #{tpu_custom_call.1} parent=1 // pred_check
      _
    $region7: #{tpu_custom_call.1} parent=1 // pred_check_branch
      %19 = sbr.rel (0) target = $region9
    $region8: #{tpu_custom_call.1} parent=1 // pred_region
      %20 = dma.done [#allocation3], 256
    $region9: #{tpu_custom_call.1} parent=1 // pred_fallthru
      _
    %v21 = vld [vmem:[#allocation2] sm:$0xff]
    %v22 = vld [vmem:[#allocation2 + $0x8] sm:$0xff]
    %23 = vst [vmem:[#allocation5] sm:$0xff] %v21
    %24 = vst [vmem:[#allocation5 + $0x8] sm:$0xff] %v22
    // Predicated region
    $region10: #{tpu_custom_call.1} parent=1 // pred_check
      _
    $region11: #{tpu_custom_call.1} parent=1 // pred_check_branch
      %26 = sbr.rel (0) target = $region13
    $region12: #{tpu_custom_call.1} parent=1 // pred_region
      %s28 = ssub.s32 256, 256
      %29 = vsyncadd [#allocation4], %s28
      %s31 = sshll.u32 [#allocation5], 4
      %s32 = int_to_ptr.vmem [resolvable:$true] %s31
      %34 = dma.vmem_to_hbm [thread:$0]  %s32, 256, %s1, [#allocation4]
    $region13: #{tpu_custom_call.1} parent=1 // pred_fallthru
      _
    // Predicated region
    $region14: #{tpu_custom_call.1} parent=1 // pred_check
      _
    $region15: #{tpu_custom_call.1} parent=1 // pred_check_branch
      %36 = sbr.rel (0) target = $region17
    $region16: #{tpu_custom_call.1} parent=1 // pred_region
      %37 = dma.done [#allocation4], 256
    $region17: #{tpu_custom_call.1} parent=1 // pred_fallthru
      _
    %38 = vsyncpa [#allocation3], 1
    %39 = vsyncpa [#allocation4], 1

</llo_original>
